<compile_context>
chip_gen: v6e
topology: v6e:2x2x1
jax: 0.10.0
libtpu: 0.0.40
codegen_flags: <defaults>
</compile_context>

<pallas_src>
import jax
import jax.numpy as jnp
from jax.experimental import pallas as pl
from jax.experimental.pallas import tpu as pltpu


def _round_up(x, m):
    return ((x + m - 1) // m) * m


def _max_tile_for_device():
    """Largest reduction tile allowed, by TPU generation (conservative default)."""
    try:
        kind = jax.devices()[0].device_kind.lower()
    except Exception:
        return 512
    if "v6" in kind or "v7" in kind or "7x" in kind:
        return 1024          # fits v6e (32 MiB default scoped) / v7x comfortably
    return 512               # v5e: 16 MiB default scoped VMEM; also v4/unknown


def _pick_tile(n, max_tile):
    """Largest power-of-two tile <= max_tile evenly dividing n; else full dim."""
    for c in (1024, 512, 256, 128):
        if c <= max_tile and n >= c and n % c == 0:
            return c
    return n


def prepare_params(params, *, compute_dtype=jnp.bfloat16):
    """One-time weight prep: cast to compute dtype, eliminate the concat by
    splitting W2, interleave per-tile so each grid step issues exactly two
    weight DMAs, and lane-pad the output projection.  Run once, keep the result
    resident on device, reuse for every forward call."""
    cd = compute_dtype
    H, two_h = params["w1i"].shape
    L = params["wo"].shape[1]
    L_pad = _round_up(max(L, 128), 128)

    tn = _pick_tile(two_h, _max_tile_for_device())
    n_tiles = two_h // tn

    # Interleave dense_1_input / dense_1_hidden column tiles -> one (H, 2*two_h)
    # array; grid step j fetches one contiguous (H, 2*tn) block.
    w1i = params["w1i"].astype(cd).reshape(H, n_tiles, tn)
    w1h = params["w1h"].astype(cd).reshape(H, n_tiles, tn)
    w1 = jnp.stack([w1i, w1h], axis=2).reshape(H, 2 * two_h)

    b1i = params["b1i"].astype(jnp.float32).reshape(n_tiles, tn)
    b1h = params["b1h"].astype(jnp.float32).reshape(n_tiles, tn)
    b1 = jnp.stack([b1i, b1h], axis=1).reshape(1, 2 * two_h)

    # Interleave dense_2 top/bottom row tiles -> one (2*two_h, H) array; grid
    # step j fetches one contiguous (2*tn, H) block (concat eliminated).
    w2 = params["w2"].astype(cd)
    w2t = w2[:two_h].reshape(n_tiles, tn, H)
    w2b = w2[two_h:].reshape(n_tiles, tn, H)
    w2i = jnp.stack([w2t, w2b], axis=1).reshape(2 * two_h, H)

    b2 = params["b2"].astype(jnp.float32).reshape(1, H)

    wo = jnp.zeros((H, L_pad), cd).at[:, :L].set(params["wo"].astype(cd))
    bo = jnp.zeros((1, L_pad), jnp.float32).at[:, :L].set(
        params["bo"].astype(jnp.float32).reshape(1, L))

    weights = {"w1": w1, "b1": b1, "w2": w2i, "b2": b2, "wo": wo, "bo": bo}
    meta = {"H": H, "two_h": two_h, "L": L, "L_pad": L_pad,
            "tn": tn, "n_tiles": n_tiles, "compute_dtype": cd}
    return weights, meta


def _head_kernel(x_ref, h_ref, w1_ref, b1_ref, w2_ref, b2_ref, wo_ref, bo_ref,
                 out_ref, acc_ref):
    """Grid = (batch tiles [parallel], dense_1-column / dense_2-reduction tiles
    [arbitrary]).  Dropout = identity (eval mode)."""
    j = pl.program_id(1)
    tn = w1_ref.shape[1] // 2   # static

    @pl.when(j == 0)
    def _():
        acc_ref[...] = jnp.zeros_like(acc_ref)

    x = x_ref[...]
    h = h_ref[...]

    # dense_1_input tile + relu   (bf16 MXU, f32 accumulate)
    a = jnp.dot(x, w1_ref[:, 0:tn],
                preferred_element_type=jnp.float32) + b1_ref[:, 0:tn]
    a = jnp.maximum(a, 0.0)

    # dense_1_hidden tile + relu
    b = jnp.dot(h, w1_ref[:, tn:2 * tn],
                preferred_element_type=jnp.float32) + b1_ref[:, tn:2 * tn]
    b = jnp.maximum(b, 0.0)

    # Partial dense_2 reduction: interleaved top/bottom W2 row tiles.
    acc_ref[...] += (
        jnp.dot(a.astype(w2_ref.dtype), w2_ref[0:tn, :],
                preferred_element_type=jnp.float32)
        + jnp.dot(b.astype(w2_ref.dtype), w2_ref[tn:2 * tn, :],
                  preferred_element_type=jnp.float32))

    @pl.when(j == pl.num_programs(1) - 1)
    def _():
        c = jnp.maximum(acc_ref[...] + b2_ref[...], 0.0)
        out_ref[...] = (
            jnp.dot(c.astype(wo_ref.dtype), wo_ref[...],
                    preferred_element_type=jnp.float32)
            + bo_ref[...]).astype(out_ref.dtype)


def roberta_cls_head(features, last_hidden_state, weights, meta):
    """features: [B, S, H]; last_hidden_state: [B, S, H] -> [B, num_labels]."""
    cd = meta["compute_dtype"]
    H, L, L_pad = meta["H"], meta["L"], meta["L_pad"]
    two_h, tn, n_tiles = meta["two_h"], meta["tn"], meta["n_tiles"]
    cbytes = jnp.dtype(cd).itemsize

    # Glue: pick the CLS token (position 0); cast + pad the (tiny) activations.
    x_cls = features[:, 0, :]
    h_cls = last_hidden_state[:, 0, :]
    B = x_cls.shape[0]

    sub = 16 if cbytes < 4 else 8          # bf16 packs 16 sublanes per vreg
    tb = _round_up(max(B, sub), sub) if B <= 256 else 256
    B_pad = _round_up(max(B, tb), tb)
    nb = B_pad // tb

    x_p = jnp.zeros((B_pad, H), cd).at[:B].set(x_cls.astype(cd))
    h_p = jnp.zeros((B_pad, H), cd).at[:B].set(h_cls.astype(cd))

    batch_blk = lambda i, j: (i, 0)
    col_blk = lambda i, j: (0, j)
    row_blk = lambda i, j: (j, 0)
    const_blk = lambda i, j: (0, 0)

    in_specs = [
        pl.BlockSpec((tb, H), batch_blk),        # x
        pl.BlockSpec((tb, H), batch_blk),        # h
        pl.BlockSpec((H, 2 * tn), col_blk),      # w1 (interleaved w1i|w1h tiles)
        pl.BlockSpec((1, 2 * tn), col_blk),      # b1
        pl.BlockSpec((2 * tn, H), row_blk),      # w2 (interleaved top|bottom tiles)
        pl.BlockSpec((1, H), const_blk),         # b2
        pl.BlockSpec((H, L_pad), const_blk),     # wo
        pl.BlockSpec((1, L_pad), const_blk),     # bo
    ]
    out_spec = pl.BlockSpec((tb, L_pad), batch_blk)

    # Explicit VMEM budget: double-buffered blocks + resident f32 accumulator,
    # plus headroom for compiler temporaries.
    vmem_bytes = 2 * (
        2 * tb * H * cbytes            # x, h
        + H * 2 * tn * cbytes          # w1 block
        + 2 * tn * 4                   # b1 block
        + 2 * tn * H * cbytes          # w2 block
        + H * 4                        # b2
        + H * L_pad * cbytes           # wo
        + L_pad * 4                    # bo
        + tb * L_pad * 4               # out
    ) + tb * H * 4                     # acc scratch
    vmem_limit = min(int(vmem_bytes * 1.25) + 4 * 1024 * 1024, 64 * 1024 * 1024)

    flops = 2 * B_pad * (4 * H * two_h + H * L_pad)
    bytes_accessed = (
        (x_p.size + h_p.size) * cbytes
        + (weights["w1"].size + weights["w2"].size + weights["wo"].size) * cbytes
        + (weights["b1"].size + weights["b2"].size + weights["bo"].size) * 4
        + B_pad * L_pad * 4)

    out_padded = pl.pallas_call(
        _head_kernel,
        out_shape=jax.ShapeDtypeStruct((B_pad, L_pad), jnp.float32),
        grid_spec=pltpu.PrefetchScalarGridSpec(
            num_scalar_prefetch=0,
            grid=(nb, n_tiles),
            in_specs=in_specs,
            out_specs=out_spec,
            scratch_shapes=[pltpu.VMEM((tb, H), jnp.float32)]),
        compiler_params=pltpu.CompilerParams(
            dimension_semantics=("parallel", "arbitrary"),
            vmem_limit_bytes=vmem_limit),
        cost_estimate=pl.CostEstimate(
            flops=flops, transcendentals=0, bytes_accessed=bytes_accessed),
    )(x_p, h_p, weights["w1"], weights["b1"], weights["w2"],
      weights["b2"], weights["wo"], weights["bo"])

    return out_padded[:B, :L]


def make_params(key, hidden_size, num_labels):
    ks = jax.random.split(key, 4)
    H = hidden_size
    scale = 0.02
    return {
        "w1i": scale * jax.random.normal(ks[0], (H, 2 * H), jnp.float32),
        "b1i": jnp.zeros((2 * H,), jnp.float32),
        "w1h": scale * jax.random.normal(ks[1], (H, 2 * H), jnp.float32),
        "b1h": jnp.full((2 * H,), 0.01, jnp.float32),
        "w2":  scale * jax.random.normal(ks[2], (4 * H, H), jnp.float32),
        "b2":  jnp.full((H,), 0.02, jnp.float32),
        "wo":  scale * jax.random.normal(ks[3], (H, num_labels), jnp.float32),
        "bo":  jnp.full((num_labels,), 0.03, jnp.float32),
    }


def _reference(features, last_hidden_state, p, compute_dtype=jnp.bfloat16):
    """Same math as the kernel (bf16 operands, f32 accumulation)."""
    cd = compute_dtype
    x = features[:, 0, :].astype(cd)
    h = last_hidden_state[:, 0, :].astype(cd)
    a = jnp.maximum(
        jnp.dot(x, p["w1i"].astype(cd), preferred_element_type=jnp.float32)
        + p["b1i"], 0.0)
    b = jnp.maximum(
        jnp.dot(h, p["w1h"].astype(cd), preferred_element_type=jnp.float32)
        + p["b1h"], 0.0)
    two_h = p["w1i"].shape[1]
    w2 = p["w2"].astype(cd)
    c = (jnp.dot(a.astype(cd), w2[:two_h], preferred_element_type=jnp.float32)
         + jnp.dot(b.astype(cd), w2[two_h:], preferred_element_type=jnp.float32)
         + p["b2"])
    c = jnp.maximum(c, 0.0)
    return (jnp.dot(c.astype(cd), p["wo"].astype(cd),
                    preferred_element_type=jnp.float32)
            + p["bo"])


if __name__ == "__main__":
    B, S, H, L = 2, 8, 32, 3
    key = jax.random.PRNGKey(0)
    k_feat, k_hid, k_par = jax.random.split(key, 3)

    features = jax.random.normal(k_feat, (B, S, H), jnp.float32)
    last_hidden_state = jax.random.normal(k_hid, (B, S, H), jnp.float32)
    params = make_params(k_par, H, L)

    # One-time weight prep (cast/split/interleave/pad) — reused for every call.
    weights, meta = prepare_params(params)

    out = roberta_cls_head(features, last_hidden_state, weights, meta)
    out = jax.block_until_ready(out)

    ref = _reference(features, last_hidden_state, params)
    assert out.shape == (B, L), out.shape
    assert jnp.allclose(out, ref, atol=1e-3, rtol=1e-3), (out, ref)

    print("KERNEL_OK")
</pallas_src>

<mosaic_0001>
module attributes {stable_mosaic.version = 11 : i64} {
  func.func @_head_kernel(%arg0: i32, %arg1: i32, %arg2: memref<16x32xbf16, #tpu.memory_space<vmem>>, %arg3: memref<16x32xbf16, #tpu.memory_space<vmem>>, %arg4: memref<32x128xbf16, #tpu.memory_space<vmem>>, %arg5: memref<1x128xf32, #tpu.memory_space<vmem>>, %arg6: memref<128x32xbf16, #tpu.memory_space<vmem>>, %arg7: memref<1x32xf32, #tpu.memory_space<vmem>>, %arg8: memref<32x128xbf16, #tpu.memory_space<vmem>>, %arg9: memref<1x128xf32, #tpu.memory_space<vmem>>, %arg10: memref<16x128xf32, #tpu.memory_space<vmem>>, %arg11: memref<16x32xf32, #tpu.memory_space<vmem>>) attributes {dimension_semantics = [#tpu.dimension_semantics<parallel>, #tpu.dimension_semantics<arbitrary>], iteration_bounds = array<i64: 1, 1>, scalar_prefetch = 0 : i64, scratch_operands = 1 : i64, tpu.core_type = #tpu.core_type<tc>, window_params = [{transform_indices = @transform_0, window_bounds = array<i64: 16, 32>}, {transform_indices = @transform_1, window_bounds = array<i64: 16, 32>}, {transform_indices = @transform_2, window_bounds = array<i64: 32, 128>}, {transform_indices = @transform_3, window_bounds = array<i64: 1, 128>}, {transform_indices = @transform_4, window_bounds = array<i64: 128, 32>}, {pipeline_mode = #tpu.pipeline_mode<synchronous>, transform_indices = @transform_5, window_bounds = array<i64: 1, 32>}, {pipeline_mode = #tpu.pipeline_mode<synchronous>, transform_indices = @transform_6, window_bounds = array<i64: 32, 128>}, {pipeline_mode = #tpu.pipeline_mode<synchronous>, transform_indices = @transform_7, window_bounds = array<i64: 1, 128>}, {transform_indices = @transform_8, window_bounds = array<i64: 16, 128>}]} {
    %c0_i32 = arith.constant 0 : i32
    %0 = arith.cmpi eq, %arg1, %c0_i32 : i32
    %1 = arith.extui %0 : i1 to i32
    %c0_i32_0 = arith.constant 0 : i32
    %2 = arith.cmpi ne, %1, %c0_i32_0 : i32
    scf.if %2 {
      %cst_26 = arith.constant 0.000000e+00 : f32
      %32 = vector.broadcast %cst_26 : f32 to vector<16x32xf32>
      %c0_27 = arith.constant 0 : index
      %c0_28 = arith.constant 0 : index
      %33 = vector.load %arg11[%c0_27, %c0_28] : memref<16x32xf32, #tpu.memory_space<vmem>>, vector<16x32xf32>
      tpu.vector_store %arg11[%c0_27, %c0_28], %32 {strides = array<i32>} : memref<16x32xf32, #tpu.memory_space<vmem>>, vector<16x32xf32>,
    } else {
    }
    %c0 = arith.constant 0 : index
    %c0_1 = arith.constant 0 : index
    %3 = vector.load %arg2[%c0, %c0_1] : memref<16x32xbf16, #tpu.memory_space<vmem>>, vector<16x32xbf16>
    %c0_2 = arith.constant 0 : index
    %c0_3 = arith.constant 0 : index
    %4 = vector.load %arg3[%c0_2, %c0_3] : memref<16x32xbf16, #tpu.memory_space<vmem>>, vector<16x32xbf16>
    %c0_4 = arith.constant 0 : index
    %c0_5 = arith.constant 0 : index
    %5 = vector.load %arg4[%c0_4, %c0_5] : memref<32x128xbf16, #tpu.memory_space<vmem>>, vector<32x64xbf16>
    %cst = arith.constant dense<0.000000e+00> : vector<16x64xf32>
    %6 = tpu.matmul %3, %5, %cst {dimension_numbers = #tpu.dot_dimension_numbers<[1], [0], [0], [1], [0, 0, 1, 1], [], []>} : vector<16x32xbf16>, vector<32x64xbf16>, vector<16x64xf32> -> vector<16x64xf32>
    %c0_6 = arith.constant 0 : index
    %c0_7 = arith.constant 0 : index
    %7 = vector.load %arg5[%c0_6, %c0_7] : memref<1x128xf32, #tpu.memory_space<vmem>>, vector<1x64xf32>
    %8 = vector.broadcast %7 : vector<1x64xf32> to vector<16x64xf32>
    %9 = arith.addf %6, %8 : vector<16x64xf32>
    %cst_8 = arith.constant 0.000000e+00 : f32
    %10 = vector.broadcast %cst_8 : f32 to vector<16x64xf32>
    %11 = arith.maximumf %9, %10 : vector<16x64xf32>
    %c0_9 = arith.constant 0 : index
    %c64 = arith.constant 64 : index
    %12 = vector.load %arg4[%c0_9, %c64] : memref<32x128xbf16, #tpu.memory_space<vmem>>, vector<32x64xbf16>
    %cst_10 = arith.constant dense<0.000000e+00> : vector<16x64xf32>
    %13 = tpu.matmul %4, %12, %cst_10 {dimension_numbers = #tpu.dot_dimension_numbers<[1], [0], [0], [1], [0, 0, 1, 1], [], []>} : vector<16x32xbf16>, vector<32x64xbf16>, vector<16x64xf32> -> vector<16x64xf32>
    %c0_11 = arith.constant 0 : index
    %c64_12 = arith.constant 64 : index
    %14 = vector.load %arg5[%c0_11, %c64_12] : memref<1x128xf32, #tpu.memory_space<vmem>>, vector<1x64xf32>
    %15 = vector.broadcast %14 : vector<1x64xf32> to vector<16x64xf32>
    %16 = arith.addf %13, %15 : vector<16x64xf32>
    %cst_13 = arith.constant 0.000000e+00 : f32
    %17 = vector.broadcast %cst_13 : f32 to vector<16x64xf32>
    %18 = arith.maximumf %16, %17 : vector<16x64xf32>
    %c0_14 = arith.constant 0 : index
    %c0_15 = arith.constant 0 : index
    %19 = vector.load %arg11[%c0_14, %c0_15] : memref<16x32xf32, #tpu.memory_space<vmem>>, vector<16x32xf32>
    %20 = arith.truncf %11 : vector<16x64xf32> to vector<16x64xbf16>
    %c0_16 = arith.constant 0 : index
    %c0_17 = arith.constant 0 : index
    %21 = vector.load %arg6[%c0_16, %c0_17] : memref<128x32xbf16, #tpu.memory_space<vmem>>, vector<64x32xbf16>
    %cst_18 = arith.constant dense<0.000000e+00> : vector<16x32xf32>
    %22 = tpu.matmul %20, %21, %cst_18 {dimension_numbers = #tpu.dot_dimension_numbers<[1], [0], [0], [1], [0, 0, 1, 1], [], []>} : vector<16x64xbf16>, vector<64x32xbf16>, vector<16x32xf32> -> vector<16x32xf32>
    %23 = arith.truncf %18 : vector<16x64xf32> to vector<16x64xbf16>
    %c64_19 = arith.constant 64 : index
    %c0_20 = arith.constant 0 : index
    %24 = vector.load %arg6[%c64_19, %c0_20] : memref<128x32xbf16, #tpu.memory_space<vmem>>, vector<64x32xbf16>
    %cst_21 = arith.constant dense<0.000000e+00> : vector<16x32xf32>
    %25 = tpu.matmul %23, %24, %cst_21 {dimension_numbers = #tpu.dot_dimension_numbers<[1], [0], [0], [1], [0, 0, 1, 1], [], []>} : vector<16x64xbf16>, vector<64x32xbf16>, vector<16x32xf32> -> vector<16x32xf32>
    %26 = arith.addf %22, %25 : vector<16x32xf32>
    %27 = arith.addf %19, %26 : vector<16x32xf32>
    %c0_22 = arith.constant 0 : index
    %c0_23 = arith.constant 0 : index
    %28 = vector.load %arg11[%c0_22, %c0_23] : memref<16x32xf32, #tpu.memory_space<vmem>>, vector<16x32xf32>
    tpu.vector_store %arg11[%c0_22, %c0_23], %27 {strides = array<i32>} : memref<16x32xf32, #tpu.memory_space<vmem>>, vector<16x32xf32>,
    %c0_i32_24 = arith.constant 0 : i32
    %29 = arith.cmpi eq, %arg1, %c0_i32_24 : i32
    %30 = arith.extui %29 : i1 to i32
    %c0_i32_25 = arith.constant 0 : i32
    %31 = arith.cmpi ne, %30, %c0_i32_25 : i32
    scf.if %31 {
      %c0_26 = arith.constant 0 : index
      %c0_27 = arith.constant 0 : index
      %32 = vector.load %arg11[%c0_26, %c0_27] : memref<16x32xf32, #tpu.memory_space<vmem>>, vector<16x32xf32>
      %c0_28 = arith.constant 0 : index
      %c0_29 = arith.constant 0 : index
      %33 = vector.load %arg7[%c0_28, %c0_29] : memref<1x32xf32, #tpu.memory_space<vmem>>, vector<1x32xf32>
      %34 = vector.broadcast %33 : vector<1x32xf32> to vector<16x32xf32>
      %35 = arith.addf %32, %34 : vector<16x32xf32>
      %cst_30 = arith.constant 0.000000e+00 : f32
      %36 = vector.broadcast %cst_30 : f32 to vector<16x32xf32>
      %37 = arith.maximumf %35, %36 : vector<16x32xf32>
      %38 = arith.truncf %37 : vector<16x32xf32> to vector<16x32xbf16>
      %c0_31 = arith.constant 0 : index
      %c0_32 = arith.constant 0 : index
      %39 = vector.load %arg8[%c0_31, %c0_32] : memref<32x128xbf16, #tpu.memory_space<vmem>>, vector<32x128xbf16>
      %cst_33 = arith.constant dense<0.000000e+00> : vector<16x128xf32>
      %40 = tpu.matmul %38, %39, %cst_33 {dimension_numbers = #tpu.dot_dimension_numbers<[1], [0], [0], [1], [0, 0, 1, 1], [], []>} : vector<16x32xbf16>, vector<32x128xbf16>, vector<16x128xf32> -> vector<16x128xf32>
      %c0_34 = arith.constant 0 : index
      %c0_35 = arith.constant 0 : index
      %41 = vector.load %arg9[%c0_34, %c0_35] : memref<1x128xf32, #tpu.memory_space<vmem>>, vector<1x128xf32>
      %42 = vector.broadcast %41 : vector<1x128xf32> to vector<16x128xf32>
      %43 = arith.addf %40, %42 : vector<16x128xf32>
      %c0_36 = arith.constant 0 : index
      %c0_37 = arith.constant 0 : index
      %44 = vector.load %arg10[%c0_36, %c0_37] : memref<16x128xf32, #tpu.memory_space<vmem>>, vector<16x128xf32>
      tpu.vector_store %arg10[%c0_36, %c0_37], %43 {strides = array<i32>} : memref<16x128xf32, #tpu.memory_space<vmem>>, vector<16x128xf32>,
    } else {
    }
    return
  }
  func.func @transform_0(%arg0: i32, %arg1: i32) -> (i32, i32) {
    %c0_i32 = arith.constant 0 : i32
    %c0_i32_0 = arith.constant 0 : i32
    return %arg0, %c0_i32 : i32, i32
  }
  func.func @transform_1(%arg0: i32, %arg1: i32) -> (i32, i32) {
    %c0_i32 = arith.constant 0 : i32
    %c0_i32_0 = arith.constant 0 : i32
    return %arg0, %c0_i32 : i32, i32
  }
  func.func @transform_2(%arg0: i32, %arg1: i32) -> (i32, i32) {
    %c0_i32 = arith.constant 0 : i32
    %c0_i32_0 = arith.constant 0 : i32
    return %c0_i32, %arg1 : i32, i32
  }
  func.func @transform_3(%arg0: i32, %arg1: i32) -> (i32, i32) {
    %c0_i32 = arith.constant 0 : i32
    %c0_i32_0 = arith.constant 0 : i32
    return %c0_i32, %arg1 : i32, i32
  }
  func.func @transform_4(%arg0: i32, %arg1: i32) -> (i32, i32) {
    %c0_i32 = arith.constant 0 : i32
    %c0_i32_0 = arith.constant 0 : i32
    return %arg1, %c0_i32 : i32, i32
  }
  func.func @transform_5(%arg0: i32, %arg1: i32) -> (i32, i32) {
    %c0_i32 = arith.constant 0 : i32
    %c0_i32_0 = arith.constant 0 : i32
    %c0_i32_1 = arith.constant 0 : i32
    return %c0_i32, %c0_i32_0 : i32, i32
  }
  func.func @transform_6(%arg0: i32, %arg1: i32) -> (i32, i32) {
    %c0_i32 = arith.constant 0 : i32
    %c0_i32_0 = arith.constant 0 : i32
    %c0_i32_1 = arith.constant 0 : i32
    return %c0_i32, %c0_i32_0 : i32, i32
  }
  func.func @transform_7(%arg0: i32, %arg1: i32) -> (i32, i32) {
    %c0_i32 = arith.constant 0 : i32
    %c0_i32_0 = arith.constant 0 : i32
    %c0_i32_1 = arith.constant 0 : i32
    return %c0_i32, %c0_i32_0 : i32, i32
  }
  func.func @transform_8(%arg0: i32, %arg1: i32) -> (i32, i32) {
    %c0_i32 = arith.constant 0 : i32
    %c0_i32_0 = arith.constant 0 : i32
    return %arg0, %c0_i32 : i32, i32
  }
}

</mosaic_0001>

<llo_original>
// kernel: tpu_custom_call.1
$region0: #{tpu_custom_call.1}
  #allocation0 [shape = 'u32[]', space=smem, size = 0x4, offset = 0x4, fixed_abs, tag = 'smem constant byte address 0x4 - core index']
  #allocation1 [shape = 'u32[144,128]{1,0:T(1,128)}', space=vmem, size = 0x12000, scoped, tag = 'internal scratch']
  #allocation2 [shape = 'f32[16,32]{1,0:T(8,128)}', space=vmem, size = 0x2000, scoped, tag = 'scratch operand']
  %s0 = inlined_call_operand.vmem [shape: bf16[16,32], index: 0, kind: input, shape index: {}]
  %s1 = inlined_call_operand.vmem [shape: bf16[16,32], index: 1, kind: input, shape index: {}]
  %s2 = inlined_call_operand.vmem [shape: bf16[32,128], index: 2, kind: input, shape index: {}]
  %s3 = inlined_call_operand.vmem [shape: f32[1,128], index: 3, kind: input, shape index: {}]
  %s4 = inlined_call_operand.vmem [shape: bf16[128,32], index: 4, kind: input, shape index: {}]
  %s5 = inlined_call_operand.vmem [shape: f32[1,32], index: 5, kind: input, shape index: {}]
  %s6 = inlined_call_operand.vmem [shape: bf16[32,128], index: 6, kind: input, shape index: {}]
  %s7 = inlined_call_operand.vmem [shape: f32[1,128], index: 7, kind: input, shape index: {}]
  %s8 = inlined_call_operand.hbm [shape: f32[16,128], index: 8, kind: output, shape index: {}]
  %s9 = sld [smem:[#allocation0]]
  $region50: #{tpu_custom_call.1} parent=0
    _
  %s11 = ssub.s32 1, %s9
  %s12 = scalar_select 0, %s11, %s9
  $region1: #{tpu_custom_call.1} parent=0
    #allocation3 [shape = 'u8[8192]{0}', space=vmem, size = 0x2000, scoped, tag = 'output window, operand 0, single buffered']
    #allocation4 [shape = 's32[1]{0}', space=sflag, size = 0x4, scoped, tag = 'scoped memory for tpu_custom_call.1']
    %13 = vsyncpa [#allocation4], 0
    // Predicated region
    $region2: #{tpu_custom_call.1} parent=1 // pred_check
      _
    $region3: #{tpu_custom_call.1} parent=1 // pred_check_branch
      %15 = sbr.rel (0) target = $region5
    $region4: #{tpu_custom_call.1} parent=1 // pred_region
      _
    $region5: #{tpu_custom_call.1} parent=1 // pred_fallthru
      _
    // Predicated region
    $region6: #{tpu_custom_call.1} parent=1 // pred_check
      _
    $region7: #{tpu_custom_call.1} parent=1 // pred_check_branch
      %17 = sbr.rel (0) target = $region9
    $region8: #{tpu_custom_call.1} parent=1 // pred_region
      _
    $region9: #{tpu_custom_call.1} parent=1 // pred_fallthru
      _
    // Predicated region
    $region10: #{tpu_custom_call.1} parent=1 // pred_check
      _
    $region11: #{tpu_custom_call.1} parent=1 // pred_check_branch
      %19 = sbr.rel (0) target = $region13
    $region12: #{tpu_custom_call.1} parent=1 // pred_region
      _
    $region13: #{tpu_custom_call.1} parent=1 // pred_fallthru
      _
    // Predicated region
    $region14: #{tpu_custom_call.1} parent=1 // pred_check
      _
    $region15: #{tpu_custom_call.1} parent=1 // pred_check_branch
      %21 = sbr.rel (0) target = $region17
    $region16: #{tpu_custom_call.1} parent=1 // pred_region
      _
    $region17: #{tpu_custom_call.1} parent=1 // pred_fallthru
      _
    // Predicated region
    $region18: #{tpu_custom_call.1} parent=1 // pred_check
      _
    $region19: #{tpu_custom_call.1} parent=1 // pred_check_branch
      %23 = sbr.rel (0) target = $region21
    $region20: #{tpu_custom_call.1} parent=1 // pred_region
      _
    $region21: #{tpu_custom_call.1} parent=1 // pred_fallthru
      _
    // Predicated region
    $region22: #{tpu_custom_call.1} parent=1 // pred_check
      _
    $region23: #{tpu_custom_call.1} parent=1 // pred_check_branch
      %25 = sbr.rel (0) target = $region25
    $region24: #{tpu_custom_call.1} parent=1 // pred_region
      _
    $region25: #{tpu_custom_call.1} parent=1 // pred_fallthru
      _
    // Predicated region
    $region26: #{tpu_custom_call.1} parent=1 // pred_check
      _
    $region27: #{tpu_custom_call.1} parent=1 // pred_check_branch
      %27 = sbr.rel (0) target = $region29
    $region28: #{tpu_custom_call.1} parent=1 // pred_region
      _
    $region29: #{tpu_custom_call.1} parent=1 // pred_fallthru
      _
    // Predicated region
    $region30: #{tpu_custom_call.1} parent=1 // pred_check
      _
    $region31: #{tpu_custom_call.1} parent=1 // pred_check_branch
      %29 = sbr.rel (0) target = $region33
    $region32: #{tpu_custom_call.1} parent=1 // pred_region
      _
    $region33: #{tpu_custom_call.1} parent=1 // pred_fallthru
      _
    %p31 = scmp.eq.s32.totalorder 0, 0
    // Predicated region
    $region34: #{tpu_custom_call.1} parent=1 // pred_check
      %p32 = pneg %p31
    $region35: #{tpu_custom_call.1} parent=1 // pred_check_branch
      %34 = sbr.rel (%p32) target = $region37
    $region36: #{tpu_custom_call.1} parent=1 // pred_region
      %vm35 = vcmask 261120
      %36 = vst.msk [vmem:[#allocation2] sm:$0xff] %vm35, 0.0
      %37 = vst.msk [vmem:[#allocation2 + $0x8] sm:$0xff] %vm35, 0.0
    $region37: #{tpu_custom_call.1} parent=1 // pred_fallthru
      _
    %v38 = vld [vmem:[%s0] sm:$0xf]
    %v39 = vld [vmem:[%s0 + $0x4] sm:$0xf]
    %v40 = vld [vmem:[%s1] sm:$0xf]
    %v41 = vld [vmem:[%s1 + $0x4] sm:$0xf]
    %v42 = vld [vmem:[%s2] sm:$0xf]
    %v43 = vld [vmem:[%s2 + $0x4] sm:$0xf]
    %v44 = vld [vmem:[%s2 + $0x8] sm:$0xf]
    %v45 = vld [vmem:[%s2 + $0xc] sm:$0xf]
    %v46 = vld [vmem:[%s3] sm:$0x1]
    %v48 = vlaneseq
    %v49 = vshrl.u32 %v48, 7
    %v50 = vsub.s32 0, %v49
    %v51 = vrot.slane %v46, %v50
    %v55 = vunpack.c.l.b16 %v38
    %v56 = vunpack.c.l.b16 %v39
    %v57 = vpack.c.b16 %v56, %v55
    %v62 = vunpack.c.l.b16 %v42
    %v63 = vunpack.c.l.b16 %v43
    %v64 = vunpack.c.l.b16 %v44
    %v65 = vunpack.c.l.b16 %v45
    %v66 = vpack.c.b16 %v63, %v62
    %v67 = vpack.c.b16 %v65, %v64
    %vm70 = vcmask 261120
    %v72 = vsel %vm70, %v57, 0
    %74 = vmatprep.subr.bf16.mxu0 0
    %75 = vmatpush1.bf16.msra.mxu0 0
    %76 = vmatprep.subr.bf16.mxu0 0
    %77 = vmatpush1.bf16.msra.mxu0 0
    %78 = vmatprep.subr.bf16.mxu0 0
    %79 = vmatpush1.bf16.msra.mxu0 0
    %80 = vmatprep.subr.bf16.mxu0 0
    %81 = vmatpush1.bf16.msra.mxu0 0
    %82 = vmatprep.subr.bf16.mxu0 0
    %83 = vmatpush1.bf16.msra.mxu0 0
    %84 = vmatprep.subr.bf16.mxu0 0
    %85 = vmatpush1.bf16.msra.mxu0 0
    %86 = vmatprep.subr.bf16.mxu0 0
    %87 = vmatpush1.bf16.msra.mxu0 %v67
    %88 = vmatprep.subr.bf16.mxu0 0
    %89 = vmatpush1.bf16.msra.mxu0 %v66
    %90 = vmatprep.subr.bf16.mxu0 0
    %91 = vmatpush2.bf16.msra.mxu0 0
    %92 = vmatprep.subr.bf16.mxu0 0
    %93 = vmatpush2.bf16.msra.mxu0 0
    %94 = vmatprep.subr.bf16.mxu0 0
    %95 = vmatpush2.bf16.msra.mxu0 0
    %96 = vmatprep.subr.bf16.mxu0 0
    %97 = vmatpush2.bf16.msra.mxu0 0
    %98 = vmatprep.subr.bf16.mxu0 0
    %99 = vmatpush2.bf16.msra.mxu0 0
    %100 = vmatprep.subr.bf16.mxu0 0
    %101 = vmatpush2.bf16.msra.mxu0 0
    %102 = vmatprep.subr.bf16.mxu0 0
    %103 = vmatpush2.bf16.msra.mxu0 0
    %104 = vmatprep.subr.bf16.mxu0 0
    %105 = vmatpush2.bf16.msra.mxu0 0
    %106 = vmatprep.mubr.bf16.mxu0 0
    %107 = vmatmul.mubr.bf16.gmra.mxu0 %v72
    %v108 = vpop.f32.mrf.mxu0
    %v109 = vadd.f32 %v51, %v108
    %v110 = vpop.f32.mrf.mxu0
    %v111 = vpop.f32.mrf.mxu0
    %v112 = vadd.f32 %v51, %v111
    %v113 = vpop.f32.mrf.mxu0
    %114 = vdwg.mxu0
    %v115 = vmax.f32 %v109, 0.0
    %v116 = vmax.f32 %v112, 0.0
    %v119 = vunpack.c.l.b16 %v40
    %v120 = vunpack.c.l.b16 %v41
    %v121 = vpack.c.b16 %v120, %v119
    %122 = vrot.lane.b32.xlu0 %v66, 64
    %v123 = vpop.permute.xlu0 %122
    %124 = vrot.lane.b32.xlu0 %v67, 64
    %v125 = vpop.permute.xlu0 %124
    %128 = vrot.lane.b32.xlu0 %v51, 64
    %v129 = vpop.permute.xlu0 %128
    %v132 = vsel %vm70, %v121, 0
    %134 = vmatprep.subr.bf16.mxu0 0
    %135 = vmatpush1.bf16.msra.mxu0 0
    %136 = vmatprep.subr.bf16.mxu0 0
    %137 = vmatpush1.bf16.msra.mxu0 0
    %138 = vmatprep.subr.bf16.mxu0 0
    %139 = vmatpush1.bf16.msra.mxu0 0
    %140 = vmatprep.subr.bf16.mxu0 0
    %141 = vmatpush1.bf16.msra.mxu0 0
    %142 = vmatprep.subr.bf16.mxu0 0
    %143 = vmatpush1.bf16.msra.mxu0 0
    %144 = vmatprep.subr.bf16.mxu0 0
    %145 = vmatpush1.bf16.msra.mxu0 0
    %146 = vmatprep.subr.bf16.mxu0 0
    %147 = vmatpush1.bf16.msra.mxu0 %v125
    %148 = vmatprep.subr.bf16.mxu0 0
    %149 = vmatpush1.bf16.msra.mxu0 %v123
    %150 = vmatprep.subr.bf16.mxu0 0
    %151 = vmatpush2.bf16.msra.mxu0 0
    %152 = vmatprep.subr.bf16.mxu0 0
    %153 = vmatpush2.bf16.msra.mxu0 0
    %154 = vmatprep.subr.bf16.mxu0 0
    %155 = vmatpush2.bf16.msra.mxu0 0
    %156 = vmatprep.subr.bf16.mxu0 0
    %157 = vmatpush2.bf16.msra.mxu0 0
    %158 = vmatprep.subr.bf16.mxu0 0
    %159 = vmatpush2.bf16.msra.mxu0 0
    %160 = vmatprep.subr.bf16.mxu0 0
    %161 = vmatpush2.bf16.msra.mxu0 0
    %162 = vmatprep.subr.bf16.mxu0 0
    %163 = vmatpush2.bf16.msra.mxu0 0
    %164 = vmatprep.subr.bf16.mxu0 0
    %165 = vmatpush2.bf16.msra.mxu0 0
    %166 = vmatprep.mubr.bf16.mxu0 0
    %167 = vmatmul.mubr.bf16.gmra.mxu0 %v132
    %v168 = vpop.f32.mrf.mxu0
    %v169 = vadd.f32 %v129, %v168
    %v170 = vpop.f32.mrf.mxu0
    %v171 = vpop.f32.mrf.mxu0
    %v172 = vadd.f32 %v129, %v171
    %v173 = vpop.f32.mrf.mxu0
    %174 = vdwg.mxu0
    %v175 = vmax.f32 %v169, 0.0
    %v176 = vmax.f32 %v172, 0.0
    %v177 = vld [vmem:[#allocation2] sm:$0xff]
    %v178 = vld [vmem:[#allocation2 + $0x8] sm:$0xff]
    %v179 = vpack.c.bf16 %v116, %v115
    %v180 = vld [vmem:[%s4] sm:$0xf]
    %v181 = vld [vmem:[%s4 + $0x4] sm:$0xf]
    %v182 = vld [vmem:[%s4 + $0x8] sm:$0xf]
    %v183 = vld [vmem:[%s4 + $0xc] sm:$0xf]
    %v184 = vld [vmem:[%s4 + $0x10] sm:$0xf]
    %v185 = vld [vmem:[%s4 + $0x14] sm:$0xf]
    %v186 = vld [vmem:[%s4 + $0x18] sm:$0xf]
    %v187 = vld [vmem:[%s4 + $0x1c] sm:$0xf]
    %v188 = vpack.c.bf16 %v176, %v175
    %v189 = vld [vmem:[%s4 + $0x20] sm:$0xf]
    %v190 = vld [vmem:[%s4 + $0x24] sm:$0xf]
    %v191 = vld [vmem:[%s4 + $0x28] sm:$0xf]
    %v192 = vld [vmem:[%s4 + $0x2c] sm:$0xf]
    %v193 = vld [vmem:[%s4 + $0x30] sm:$0xf]
    %v194 = vld [vmem:[%s4 + $0x34] sm:$0xf]
    %v195 = vld [vmem:[%s4 + $0x38] sm:$0xf]
    %v196 = vld [vmem:[%s4 + $0x3c] sm:$0xf]
    %v205 = vunpack.c.l.b16 %v189
    %v206 = vunpack.c.l.b16 %v190
    %v207 = vunpack.c.l.b16 %v191
    %v208 = vunpack.c.l.b16 %v192
    %v209 = vunpack.c.l.b16 %v193
    %v210 = vunpack.c.l.b16 %v194
    %v211 = vunpack.c.l.b16 %v195
    %v212 = vunpack.c.l.b16 %v196
    %v213 = vpack.c.b16 %v206, %v205
    %v214 = vpack.c.b16 %v208, %v207
    %v215 = vpack.c.b16 %v210, %v209
    %v216 = vpack.c.b16 %v212, %v211
    %vm221 = vcmask 523264
    %v223 = vsel %vm221, %v188, 0
    %225 = vmatprep.subr.bf16.mxu0 0
    %226 = vmatpush1.bf16.msra.mxu0 0
    %227 = vmatprep.subr.bf16.mxu0 0
    %228 = vmatpush1.bf16.msra.mxu0 0
    %229 = vmatprep.subr.bf16.mxu0 0
    %230 = vmatpush1.bf16.msra.mxu0 0
    %231 = vmatprep.subr.bf16.mxu0 0
    %232 = vmatpush1.bf16.msra.mxu0 0
    %233 = vmatprep.subr.bf16.mxu0 0
    %234 = vmatpush1.bf16.msra.mxu0 %v216
    %235 = vmatprep.subr.bf16.mxu0 0
    %236 = vmatpush1.bf16.msra.mxu0 %v215
    %237 = vmatprep.subr.bf16.mxu0 0
    %238 = vmatpush1.bf16.msra.mxu0 %v214
    %239 = vmatprep.subr.bf16.mxu0 0
    %240 = vmatpush1.bf16.msra.mxu0 %v213
    %241 = vmatprep.subr.bf16.mxu0 0
    %242 = vmatpush2.bf16.msra.mxu0 0
    %243 = vmatprep.subr.bf16.mxu0 0
    %244 = vmatpush2.bf16.msra.mxu0 0
    %245 = vmatprep.subr.bf16.mxu0 0
    %246 = vmatpush2.bf16.msra.mxu0 0
    %247 = vmatprep.subr.bf16.mxu0 0
    %248 = vmatpush2.bf16.msra.mxu0 0
    %249 = vmatprep.subr.bf16.mxu0 0
    %250 = vmatpush2.bf16.msra.mxu0 0
    %251 = vmatprep.subr.bf16.mxu0 0
    %252 = vmatpush2.bf16.msra.mxu0 0
    %253 = vmatprep.subr.bf16.mxu0 0
    %254 = vmatpush2.bf16.msra.mxu0 0
    %255 = vmatprep.subr.bf16.mxu0 0
    %256 = vmatpush2.bf16.msra.mxu0 0
    %257 = vmatprep.mubr.bf16.mxu0 0
    %258 = vmatmul.mubr.bf16.gmra.mxu0 %v223
    %v259 = vpop.f32.mrf.mxu0
    %v260 = vadd.f32 0.0, %v259
    %v261 = vpop.f32.mrf.mxu0
    %v262 = vpop.f32.mrf.mxu0
    %v263 = vadd.f32 0.0, %v262
    %v264 = vpop.f32.mrf.mxu0
    %265 = vdwg.mxu0
    %v274 = vunpack.c.l.b16 %v180
    %v275 = vunpack.c.l.b16 %v181
    %v276 = vunpack.c.l.b16 %v182
    %v277 = vunpack.c.l.b16 %v183
    %v278 = vunpack.c.l.b16 %v184
    %v279 = vunpack.c.l.b16 %v185
    %v280 = vunpack.c.l.b16 %v186
    %v281 = vunpack.c.l.b16 %v187
    %v282 = vpack.c.b16 %v275, %v274
    %v283 = vpack.c.b16 %v277, %v276
    %v284 = vpack.c.b16 %v279, %v278
    %v285 = vpack.c.b16 %v281, %v280
    %v291 = vsel %vm221, %v179, 0
    %293 = vmatprep.subr.bf16.mxu0 0
    %294 = vmatpush1.bf16.msra.mxu0 0
    %295 = vmatprep.subr.bf16.mxu0 0
    %296 = vmatpush1.bf16.msra.mxu0 0
    %297 = vmatprep.subr.bf16.mxu0 0
    %298 = vmatpush1.bf16.msra.mxu0 0
    %299 = vmatprep.subr.bf16.mxu0 0
    %300 = vmatpush1.bf16.msra.mxu0 0
    %301 = vmatprep.subr.bf16.mxu0 0
    %302 = vmatpush1.bf16.msra.mxu0 %v285
    %303 = vmatprep.subr.bf16.mxu0 0
    %304 = vmatpush1.bf16.msra.mxu0 %v284
    %305 = vmatprep.subr.bf16.mxu0 0
    %306 = vmatpush1.bf16.msra.mxu0 %v283
    %307 = vmatprep.subr.bf16.mxu0 0
    %308 = vmatpush1.bf16.msra.mxu0 %v282
    %309 = vmatprep.subr.bf16.mxu0 0
    %310 = vmatpush2.bf16.msra.mxu0 0
    %311 = vmatprep.subr.bf16.mxu0 0
    %312 = vmatpush2.bf16.msra.mxu0 0
    %313 = vmatprep.subr.bf16.mxu0 0
    %314 = vmatpush2.bf16.msra.mxu0 0
    %315 = vmatprep.subr.bf16.mxu0 0
    %316 = vmatpush2.bf16.msra.mxu0 0
    %317 = vmatprep.subr.bf16.mxu0 0
    %318 = vmatpush2.bf16.msra.mxu0 0
    %319 = vmatprep.subr.bf16.mxu0 0
    %320 = vmatpush2.bf16.msra.mxu0 0
    %321 = vmatprep.subr.bf16.mxu0 0
    %322 = vmatpush2.bf16.msra.mxu0 0
    %323 = vmatprep.subr.bf16.mxu0 0
    %324 = vmatpush2.bf16.msra.mxu0 0
    %325 = vmatprep.mubr.bf16.mxu0 0
    %326 = vmatmul.mubr.bf16.gmra.mxu0 %v291
    %v327 = vpop.f32.mrf.mxu0
    %v328 = vadd.f32 %v260, %v327
    %v329 = vpop.f32.mrf.mxu0
    %v330 = vpop.f32.mrf.mxu0
    %v331 = vadd.f32 %v263, %v330
    %v332 = vpop.f32.mrf.mxu0
    %333 = vdwg.mxu0
    %v334 = vadd.f32 %v177, %v328
    %v335 = vadd.f32 %v178, %v331
    %336 = vst.msk [vmem:[#allocation2] sm:$0xff] %vm70, %v334
    %337 = vst.msk [vmem:[#allocation2 + $0x8] sm:$0xff] %vm70, %v335
    // Predicated region
    $region38: #{tpu_custom_call.1} parent=1 // pred_check
      %p338 = pneg %p31
    $region39: #{tpu_custom_call.1} parent=1 // pred_check_branch
      %340 = sbr.rel (%p338) target = $region41
    $region40: #{tpu_custom_call.1} parent=1 // pred_region
      %v341 = vld [vmem:[#allocation2] sm:$0xff]
      %v342 = vld [vmem:[#allocation2 + $0x8] sm:$0xff]
      %v343 = vld [vmem:[%s5] sm:$0x1]
      %v345 = vlaneseq
      %v346 = vshrl.u32 %v345, 7
      %v347 = vsub.s32 0, %v346
      %v348 = vrot.slane %v343, %v347
      %v350 = vadd.f32 %v341, %v348
      %v351 = vadd.f32 %v342, %v348
      %v352 = vmax.f32 %v350, 0.0
      %v353 = vmax.f32 %v351, 0.0
      %v354 = vpack.c.bf16 %v353, %v352
      %v355 = vld [vmem:[%s6] sm:$0xf]
      %v356 = vld [vmem:[%s6 + $0x4] sm:$0xf]
      %v357 = vld [vmem:[%s6 + $0x8] sm:$0xf]
      %v358 = vld [vmem:[%s6 + $0xc] sm:$0xf]
      %v359 = vld [vmem:[%s7] sm:$0x1]
      %v361 = vlaneseq
      %v362 = vshrl.u32 %v361, 7
      %v363 = vsub.s32 0, %v362
      %v364 = vrot.slane %v359, %v363
      %v370 = vunpack.c.l.b16 %v355
      %v371 = vunpack.c.l.b16 %v356
      %v372 = vunpack.c.l.b16 %v357
      %v373 = vunpack.c.l.b16 %v358
      %v374 = vpack.c.b16 %v371, %v370
      %v375 = vpack.c.b16 %v373, %v372
      %v379 = vsel %vm70, %v354, 0
      %381 = vmatprep.subr.bf16.mxu0 0
      %382 = vmatpush1.bf16.msra.mxu0 0
      %383 = vmatprep.subr.bf16.mxu0 0
      %384 = vmatpush1.bf16.msra.mxu0 0
      %385 = vmatprep.subr.bf16.mxu0 0
      %386 = vmatpush1.bf16.msra.mxu0 0
      %387 = vmatprep.subr.bf16.mxu0 0
      %388 = vmatpush1.bf16.msra.mxu0 0
      %389 = vmatprep.subr.bf16.mxu0 0
      %390 = vmatpush1.bf16.msra.mxu0 0
      %391 = vmatprep.subr.bf16.mxu0 0
      %392 = vmatpush1.bf16.msra.mxu0 0
      %393 = vmatprep.subr.bf16.mxu0 0
      %394 = vmatpush1.bf16.msra.mxu0 %v375
      %395 = vmatprep.subr.bf16.mxu0 0
      %396 = vmatpush1.bf16.msra.mxu0 %v374
      %397 = vmatprep.subr.bf16.mxu0 0
      %398 = vmatpush2.bf16.msra.mxu0 0
      %399 = vmatprep.subr.bf16.mxu0 0
      %400 = vmatpush2.bf16.msra.mxu0 0
      %401 = vmatprep.subr.bf16.mxu0 0
      %402 = vmatpush2.bf16.msra.mxu0 0
      %403 = vmatprep.subr.bf16.mxu0 0
      %404 = vmatpush2.bf16.msra.mxu0 0
      %405 = vmatprep.subr.bf16.mxu0 0
      %406 = vmatpush2.bf16.msra.mxu0 0
      %407 = vmatprep.subr.bf16.mxu0 0
      %408 = vmatpush2.bf16.msra.mxu0 0
      %409 = vmatprep.subr.bf16.mxu0 0
      %410 = vmatpush2.bf16.msra.mxu0 0
      %411 = vmatprep.subr.bf16.mxu0 0
      %412 = vmatpush2.bf16.msra.mxu0 0
      %413 = vmatprep.mubr.bf16.mxu0 0
      %414 = vmatmul.mubr.bf16.gmra.mxu0 %v379
      %v415 = vpop.f32.mrf.mxu0
      %v416 = vadd.f32 %v364, %v415
      %v417 = vpop.f32.mrf.mxu0
      %v418 = vpop.f32.mrf.mxu0
      %v419 = vadd.f32 %v364, %v418
      %v420 = vpop.f32.mrf.mxu0
      %421 = vdwg.mxu0
      %422 = vst [vmem:[#allocation3] sm:$0xff] %v416
      %423 = vst [vmem:[#allocation3 + $0x8] sm:$0xff] %v419
    $region41: #{tpu_custom_call.1} parent=1 // pred_fallthru
      _
    // Predicated region
    $region42: #{tpu_custom_call.1} parent=1 // pred_check
      _
    $region43: #{tpu_custom_call.1} parent=1 // pred_check_branch
      %425 = sbr.rel (0) target = $region45
    $region44: #{tpu_custom_call.1} parent=1 // pred_region
      %s427 = ssub.s32 256, 256
      %428 = vsyncadd [#allocation4], %s427
      %s429 = sshll.u32 [#allocation3], 4
      %s430 = int_to_ptr.vmem [resolvable:$true] %s429
      %435 = dma.vmem_to_hbm [thread:$0]  %s430, 256, %s8, [#allocation4], 128, 128, 8
    $region45: #{tpu_custom_call.1} parent=1 // pred_fallthru
      _
    // Predicated region
    $region46: #{tpu_custom_call.1} parent=1 // pred_check
      _
    $region47: #{tpu_custom_call.1} parent=1 // pred_check_branch
      %437 = sbr.rel (0) target = $region49
    $region48: #{tpu_custom_call.1} parent=1 // pred_region
      %438 = dma.done [#allocation4], 256
    $region49: #{tpu_custom_call.1} parent=1 // pred_fallthru
      _
    %439 = vsyncpa [#allocation4], 1

</llo_original>
